<compile_context>
chip_gen: v5e
topology: v5e:2x2
jax: 0.10.0
libtpu: 0.0.40
codegen_flags: <defaults>
</compile_context>

<pallas_src>
import jax
import jax.numpy as jnp
from jax import lax
from jax.experimental import pallas as pl
from jax.experimental.pallas import tpu as pltpu

_LANE = 128  # TPU vreg lane width


def _round_up(x, m):
    return (x + m - 1) // m * m


def _value_mlp_kernel(x_ref,
                      w1_ref, b1_ref,
                      w2_ref, b2_ref,
                      w3_ref, b3_ref,
                      w4_ref, b4_ref,
                      o_ref):
    # x_ref: [tile, state_dim] in its natural layout.  The first matmul contracts the
    # last dims of both operands (A @ B^T), so the MXU consumes the transposed states
    # and the result already has the batch on the lane axis: [32, tile].
    x = x_ref[...]
    h = jnp.tanh(
        lax.dot_general(w1_ref[...], x, (((1,), (1,)), ((), ())),
                        preferred_element_type=jnp.float32) + b1_ref[...])      # [32, tile]
    h = jnp.tanh(jnp.dot(w2_ref[...], h,
                         preferred_element_type=jnp.float32) + b2_ref[...])     # [16, tile]
    h = jnp.tanh(jnp.dot(w3_ref[...], h,
                         preferred_element_type=jnp.float32) + b3_ref[...])     # [8, tile]
    o_ref[...] = (jnp.dot(w4_ref[...], h,
                          preferred_element_type=jnp.float32)
                  + b4_ref[...]).astype(o_ref.dtype)                            # [1, tile]


def value_network_forward(states, params, *, batch_tile=4096):
    """states: f32[B, state_dim] -> f32[B, 1] (ValueNetwork forward).

    batch_tile: batch elements (lanes) per grid step.  Rounded up to the 128-lane
    width; large by default so the ~0.35us per-grid-step overhead and short DMAs are
    amortized.  For B <= 2*batch_tile the tile shrinks to ~ceil(B/2) (128-aligned) so
    the grid keeps >=2 parallel steps and both v7x TensorCores get work.
    """
    B, state_dim = states.shape
    (w1, b1), (w2, b2), (w3, b3), (w4, b4) = params

    batch_tile = max(_LANE, _round_up(batch_tile, _LANE))
    b_lanes = _round_up(B, _LANE)
    two_step_tile = _round_up(pl.cdiv(b_lanes, 2), _LANE)
    tile = max(_LANE, min(batch_tile, two_step_tile))
    grid = (pl.cdiv(B, tile),)

    def const_spec(shape):
        # Grid-invariant weights / biases: constant block index -> fetched once.
        return pl.BlockSpec(shape, lambda i: (0, 0))

    in_specs = [pl.BlockSpec((tile, state_dim), lambda i: (i, 0))]   # natural-layout states tile
    for w, b in params:
        in_specs += [const_spec(w.shape), const_spec(b.shape)]

    out = pl.pallas_call(
        _value_mlp_kernel,
        out_shape=jax.ShapeDtypeStruct((1, B), jnp.float32),
        grid_spec=pltpu.PrefetchScalarGridSpec(
            num_scalar_prefetch=0,
            grid=grid,
            in_specs=in_specs,
            # Lane-dense output block -> unmasked full-width stores (only the final
            # boundary block is masked when B is not a multiple of 128).
            out_specs=pl.BlockSpec((1, tile), lambda i: (0, i)),
        ),
        compiler_params=pltpu.CompilerParams(
            dimension_semantics=("parallel",),
        ),
    )(states, w1, b1, w2, b2, w3, b3, w4, b4)

    # (1, B) -> (B, 1): contiguity-preserving reshape, no extra HBM pass.
    return out.reshape(B, 1)


def init_value_network_params(key, state_dim):
    """Init matching torch.nn.Linear defaults: U(-1/sqrt(fan_in), 1/sqrt(fan_in)).

    Weights stored torch-style as [out_features, in_features]; biases as
    [out_features, 1] (2-D for TPU layout).
    """
    dims = [state_dim, 32, 16, 8, 1]
    params = []
    for fan_in, fan_out in zip(dims[:-1], dims[1:]):
        key, kw, kb = jax.random.split(key, 3)
        bound = 1.0 / jnp.sqrt(jnp.float32(fan_in))
        w = jax.random.uniform(kw, (fan_out, fan_in), jnp.float32, -bound, bound)
        b = jax.random.uniform(kb, (fan_out, 1), jnp.float32, -bound, bound)
        params.append((w, b))
    return params


def _reference_forward(states, params):
    # Pure-JAX f32 reference matching the PyTorch module semantics.
    h = states
    for i, (w, b) in enumerate(params):
        h = h @ w.T + b[:, 0]
        if i < len(params) - 1:
            h = jnp.tanh(h)
    return h


if __name__ == "__main__":
    key = jax.random.PRNGKey(0)
    state_dim = 8
    batch = 300  # not lane-aligned on purpose: exercises boundary masking + a 2-step grid

    key, k_params, k_states = jax.random.split(key, 3)
    params = init_value_network_params(k_params, state_dim)
    states = jax.random.normal(k_states, (batch, state_dim), jnp.float32)

    out = value_network_forward(states, params)
    out = jax.block_until_ready(out)

    ref = _reference_forward(states, params)
    assert out.shape == (batch, 1), out.shape
    # Both sides use TPU default matmul precision (bf16 passes, f32 accumulation);
    # K,N <= 32 keeps the accumulated difference well under this tolerance.
    assert jnp.allclose(out, ref, atol=2e-2, rtol=2e-2), float(jnp.max(jnp.abs(out - ref)))
    print("KERNEL_OK")
</pallas_src>

<mosaic_0001>
module attributes {stable_mosaic.version = 11 : i64} {
  func.func @_value_mlp_kernel(%arg0: i32, %arg1: memref<256x8xf32, #tpu.memory_space<vmem>>, %arg2: memref<32x8xf32, #tpu.memory_space<vmem>>, %arg3: memref<32x1xf32, #tpu.memory_space<vmem>>, %arg4: memref<16x32xf32, #tpu.memory_space<vmem>>, %arg5: memref<16x1xf32, #tpu.memory_space<vmem>>, %arg6: memref<8x16xf32, #tpu.memory_space<vmem>>, %arg7: memref<8x1xf32, #tpu.memory_space<vmem>>, %arg8: memref<1x8xf32, #tpu.memory_space<vmem>>, %arg9: memref<1x1xf32, #tpu.memory_space<vmem>>, %arg10: memref<1x256xf32, #tpu.memory_space<vmem>>) attributes {dimension_semantics = [#tpu.dimension_semantics<parallel>], iteration_bounds = array<i64: 2>, scalar_prefetch = 0 : i64, scratch_operands = 0 : i64, tpu.core_type = #tpu.core_type<tc>, window_params = [{transform_indices = @transform_0, window_bounds = array<i64: 256, 8>}, {pipeline_mode = #tpu.pipeline_mode<synchronous>, transform_indices = @transform_1, window_bounds = array<i64: 32, 8>}, {pipeline_mode = #tpu.pipeline_mode<synchronous>, transform_indices = @transform_2, window_bounds = array<i64: 32, 1>}, {pipeline_mode = #tpu.pipeline_mode<synchronous>, transform_indices = @transform_3, window_bounds = array<i64: 16, 32>}, {pipeline_mode = #tpu.pipeline_mode<synchronous>, transform_indices = @transform_4, window_bounds = array<i64: 16, 1>}, {pipeline_mode = #tpu.pipeline_mode<synchronous>, transform_indices = @transform_5, window_bounds = array<i64: 8, 16>}, {pipeline_mode = #tpu.pipeline_mode<synchronous>, transform_indices = @transform_6, window_bounds = array<i64: 8, 1>}, {pipeline_mode = #tpu.pipeline_mode<synchronous>, transform_indices = @transform_7, window_bounds = array<i64: 1, 8>}, {pipeline_mode = #tpu.pipeline_mode<synchronous>, transform_indices = @transform_8, window_bounds = array<i64: 1, 1>}, {transform_indices = @transform_9, window_bounds = array<i64: 1, 256>}]} {
    %c0 = arith.constant 0 : index
    %c0_0 = arith.constant 0 : index
    %0 = vector.load %arg1[%c0, %c0_0] : memref<256x8xf32, #tpu.memory_space<vmem>>, vector<256x8xf32>
    %c0_1 = arith.constant 0 : index
    %c0_2 = arith.constant 0 : index
    %1 = vector.load %arg2[%c0_1, %c0_2] : memref<32x8xf32, #tpu.memory_space<vmem>>, vector<32x8xf32>
    %cst = arith.constant dense<0.000000e+00> : vector<32x256xf32>
    %2 = tpu.matmul %1, %0, %cst {dimension_numbers = #tpu.dot_dimension_numbers<[1], [1], [0], [0], [0, 0, 1, 0], [], []>} : vector<32x8xf32>, vector<256x8xf32>, vector<32x256xf32> -> vector<32x256xf32>
    %c0_3 = arith.constant 0 : index
    %c0_4 = arith.constant 0 : index
    %3 = vector.load %arg3[%c0_3, %c0_4] : memref<32x1xf32, #tpu.memory_space<vmem>>, vector<32x1xf32>
    %4 = vector.broadcast %3 : vector<32x1xf32> to vector<32x256xf32>
    %5 = arith.addf %2, %4 : vector<32x256xf32>
    %6 = math.tanh %5 : vector<32x256xf32>
    %c0_5 = arith.constant 0 : index
    %c0_6 = arith.constant 0 : index
    %7 = vector.load %arg4[%c0_5, %c0_6] : memref<16x32xf32, #tpu.memory_space<vmem>>, vector<16x32xf32>
    %cst_7 = arith.constant dense<0.000000e+00> : vector<16x256xf32>
    %8 = tpu.matmul %7, %6, %cst_7 {dimension_numbers = #tpu.dot_dimension_numbers<[1], [0], [0], [1], [0, 0, 1, 1], [], []>} : vector<16x32xf32>, vector<32x256xf32>, vector<16x256xf32> -> vector<16x256xf32>
    %c0_8 = arith.constant 0 : index
    %c0_9 = arith.constant 0 : index
    %9 = vector.load %arg5[%c0_8, %c0_9] : memref<16x1xf32, #tpu.memory_space<vmem>>, vector<16x1xf32>
    %10 = vector.broadcast %9 : vector<16x1xf32> to vector<16x256xf32>
    %11 = arith.addf %8, %10 : vector<16x256xf32>
    %12 = math.tanh %11 : vector<16x256xf32>
    %c0_10 = arith.constant 0 : index
    %c0_11 = arith.constant 0 : index
    %13 = vector.load %arg6[%c0_10, %c0_11] : memref<8x16xf32, #tpu.memory_space<vmem>>, vector<8x16xf32>
    %cst_12 = arith.constant dense<0.000000e+00> : vector<8x256xf32>
    %14 = tpu.matmul %13, %12, %cst_12 {dimension_numbers = #tpu.dot_dimension_numbers<[1], [0], [0], [1], [0, 0, 1, 1], [], []>} : vector<8x16xf32>, vector<16x256xf32>, vector<8x256xf32> -> vector<8x256xf32>
    %c0_13 = arith.constant 0 : index
    %c0_14 = arith.constant 0 : index
    %15 = vector.load %arg7[%c0_13, %c0_14] : memref<8x1xf32, #tpu.memory_space<vmem>>, vector<8x1xf32>
    %16 = vector.broadcast %15 : vector<8x1xf32> to vector<8x256xf32>
    %17 = arith.addf %14, %16 : vector<8x256xf32>
    %18 = math.tanh %17 : vector<8x256xf32>
    %c0_15 = arith.constant 0 : index
    %c0_16 = arith.constant 0 : index
    %19 = vector.load %arg8[%c0_15, %c0_16] : memref<1x8xf32, #tpu.memory_space<vmem>>, vector<1x8xf32>
    %cst_17 = arith.constant dense<0.000000e+00> : vector<1x256xf32>
    %20 = tpu.matmul %19, %18, %cst_17 {dimension_numbers = #tpu.dot_dimension_numbers<[1], [0], [0], [1], [0, 0, 1, 1], [], []>} : vector<1x8xf32>, vector<8x256xf32>, vector<1x256xf32> -> vector<1x256xf32>
    %c0_18 = arith.constant 0 : index
    %c0_19 = arith.constant 0 : index
    %21 = vector.load %arg9[%c0_18, %c0_19] : memref<1x1xf32, #tpu.memory_space<vmem>>, vector<1x1xf32>
    %22 = vector.broadcast %21 : vector<1x1xf32> to vector<1x256xf32>
    %23 = arith.addf %20, %22 : vector<1x256xf32>
    %c0_20 = arith.constant 0 : index
    %c0_21 = arith.constant 0 : index
    %24 = vector.load %arg10[%c0_20, %c0_21] : memref<1x256xf32, #tpu.memory_space<vmem>>, vector<1x256xf32>
    tpu.vector_store %arg10[%c0_20, %c0_21], %23 {strides = array<i32>} : memref<1x256xf32, #tpu.memory_space<vmem>>, vector<1x256xf32>,
    return
  }
  func.func @transform_0(%arg0: i32) -> (i32, i32) {
    %c0_i32 = arith.constant 0 : i32
    %c0_i32_0 = arith.constant 0 : i32
    return %arg0, %c0_i32 : i32, i32
  }
  func.func @transform_1(%arg0: i32) -> (i32, i32) {
    %c0_i32 = arith.constant 0 : i32
    %c0_i32_0 = arith.constant 0 : i32
    %c0_i32_1 = arith.constant 0 : i32
    return %c0_i32, %c0_i32_0 : i32, i32
  }
  func.func @transform_2(%arg0: i32) -> (i32, i32) {
    %c0_i32 = arith.constant 0 : i32
    %c0_i32_0 = arith.constant 0 : i32
    %c0_i32_1 = arith.constant 0 : i32
    return %c0_i32, %c0_i32_0 : i32, i32
  }
  func.func @transform_3(%arg0: i32) -> (i32, i32) {
    %c0_i32 = arith.constant 0 : i32
    %c0_i32_0 = arith.constant 0 : i32
    %c0_i32_1 = arith.constant 0 : i32
    return %c0_i32, %c0_i32_0 : i32, i32
  }
  func.func @transform_4(%arg0: i32) -> (i32, i32) {
    %c0_i32 = arith.constant 0 : i32
    %c0_i32_0 = arith.constant 0 : i32
    %c0_i32_1 = arith.constant 0 : i32
    return %c0_i32, %c0_i32_0 : i32, i32
  }
  func.func @transform_5(%arg0: i32) -> (i32, i32) {
    %c0_i32 = arith.constant 0 : i32
    %c0_i32_0 = arith.constant 0 : i32
    %c0_i32_1 = arith.constant 0 : i32
    return %c0_i32, %c0_i32_0 : i32, i32
  }
  func.func @transform_6(%arg0: i32) -> (i32, i32) {
    %c0_i32 = arith.constant 0 : i32
    %c0_i32_0 = arith.constant 0 : i32
    %c0_i32_1 = arith.constant 0 : i32
    return %c0_i32, %c0_i32_0 : i32, i32
  }
  func.func @transform_7(%arg0: i32) -> (i32, i32) {
    %c0_i32 = arith.constant 0 : i32
    %c0_i32_0 = arith.constant 0 : i32
    %c0_i32_1 = arith.constant 0 : i32
    return %c0_i32, %c0_i32_0 : i32, i32
  }
  func.func @transform_8(%arg0: i32) -> (i32, i32) {
    %c0_i32 = arith.constant 0 : i32
    %c0_i32_0 = arith.constant 0 : i32
    %c0_i32_1 = arith.constant 0 : i32
    return %c0_i32, %c0_i32_0 : i32, i32
  }
  func.func @transform_9(%arg0: i32) -> (i32, i32) {
    %c0_i32 = arith.constant 0 : i32
    %c0_i32_0 = arith.constant 0 : i32
    return %c0_i32, %arg0 : i32, i32
  }
}

</mosaic_0001>

<llo_original>
// kernel: tpu_custom_call.1
$region0: #{tpu_custom_call.1}
  #allocation0 [shape = 'u32[]', space=smem, size = 0x4, offset = 0x4, fixed_abs, tag = 'smem constant byte address 0x4 - core index']
  #allocation1 [shape = 'u32[72,128]{1,0:T(1,128)}', space=vmem, size = 0x9000, scoped, tag = 'internal scratch']
  #allocation2 [shape = 'f32[1,1]{1,0:T(1,128)S(1)}', space=vmem, size = 0x200, scoped, tag = 'scoped memory for tpu_custom_call.1']
  %s0 = inlined_call_operand.vmem [shape: f32[300,8], index: 0, kind: input, shape index: {}]
  %s1 = inlined_call_operand.vmem [shape: f32[32,8], index: 1, kind: input, shape index: {}]
  %s2 = inlined_call_operand.vmem [shape: f32[32,1], index: 2, kind: input, shape index: {}]
  %s3 = inlined_call_operand.vmem [shape: f32[16,32], index: 3, kind: input, shape index: {}]
  %s4 = inlined_call_operand.vmem [shape: f32[16,1], index: 4, kind: input, shape index: {}]
  %s5 = inlined_call_operand.vmem [shape: f32[8,16], index: 5, kind: input, shape index: {}]
  %s6 = inlined_call_operand.vmem [shape: f32[8,1], index: 6, kind: input, shape index: {}]
  %s7 = inlined_call_operand.vmem [shape: f32[1,8], index: 7, kind: input, shape index: {}]
  %s8 = inlined_call_operand.<no memory space> [shape: f32[1,1], index: 8, kind: input, shape index: {}]
  %s9 = inlined_call_operand.hbm [shape: f32[1,300], index: 9, kind: output, shape index: {}]
  %s10 = sld [smem:[#allocation0]]
  $region69: #{tpu_custom_call.1} parent=0
    _
  %s12 = ssub.s32 1, %s10
  %s13 = scalar_select 0, %s12, %s10
  %v14 = vstv %s8
  %15 = vst [vmem:[#allocation2] sm:$0x1] %v14
  $region1: #{tpu_custom_call.1} parent=0
    #allocation3 [shape = 'u8[2048]{0}', space=vmem, size = 0x800, scoped, tag = 'output window, operand 0']
    #allocation4 [shape = 's32[2]{0}', space=sflag, size = 0x8, scoped, tag = 'scoped memory for tpu_custom_call.1']
    %16 = vsyncpa [#allocation4], 0
    %s17 = scalar_lea.sflag [#allocation4], 1
    %18 = vsyncpa %s17, 0
    loop: start=0, step=1, limit=4
    $region2: #{tpu_custom_call.1} parent=1 // loop_pre_header
      _
    $region3: #{tpu_custom_call.1} parent=1 // loop_header
      %s20 = sphi 0, %s24
      %p21 = scmp.ge.s32.totalorder %s20, 4
      %s30 = sphi 0, %s32
      %s33 = sphi 0, %s30
      %s34 = sphi 0, %s33
      %s50 = sphi 0, %s34
      %s54 = sphi 0, %s54
      %s56 = sphi 0, %s54
      %s57 = sphi 0, %s56
      %s71 = sphi 0, %s57
      %s75 = sphi 0, %s75
      %s77 = sphi 0, %s75
      %s78 = sphi 0, %s77
      %s92 = sphi 0, %s78
      %s96 = sphi 0, %s96
      %s98 = sphi 0, %s96
      %s99 = sphi 0, %s98
      %s113 = sphi 0, %s99
      %s117 = sphi 0, %s117
      %s119 = sphi 0, %s117
      %s120 = sphi 0, %s119
      %s134 = sphi 0, %s120
      %s138 = sphi 0, %s138
      %s140 = sphi 0, %s138
      %s141 = sphi 0, %s140
      %s155 = sphi 0, %s141
      %s159 = sphi 0, %s159
      %s161 = sphi 0, %s159
      %s162 = sphi 0, %s161
      %s176 = sphi 0, %s162
      %s180 = sphi 0, %s180
      %s182 = sphi 0, %s180
      %s183 = sphi 0, %s182
      %s197 = sphi 0, %s183
      %s201 = sphi 0, %s201
      %s203 = sphi 0, %s201
      %s204 = sphi 0, %s203
      %s218 = sphi 0, %s204
      %s224 = sphi 0, %s226
      %s227 = sphi 0, %s224
      %s228 = sphi 0, %s227
      %s244 = sphi 0, %s228
    $region4: #{tpu_custom_call.1} parent=1 // loop_header_branch
      %23 = sbr.rel (%p21) target = $region8
    $region5: #{tpu_custom_call.1} parent=1 // loop_body
      %s25 = ssub.s32 %s20, 1
      %s26 = ssub.s32 %s20, 2
      %s27 = sadd.s32 %s20, 1
      %s28 = ssub.s32 %s20, %s27
      %p29 = scmp.eq.s32.totalorder %s28, 0
      %s31 = sadd.s32 %s30, 1
      %s32 = scalar_select %p29, %s30, %s31
      %p35 = pneg %p29
      %p36 = scmp.eq.s32.totalorder %s20, 1
      %p37 = por %p35, %p36
      %p38 = scmp.ne.s32.totalorder %s30, %s33
      %p39 = scmp.eq.s32.totalorder %s20, 0
      %p40 = por %p38, %p39
      %p41 = scmp.ne.s32.totalorder %s30, %s33
      %p42 = scmp.eq.s32.totalorder %s25, 1
      %p43 = por %p41, %p42
      %p44 = scmp.ne.s32.totalorder %s33, %s34
      %p45 = scmp.eq.s32.totalorder %s25, 0
      %p46 = por %p44, %p45
      %p47 = scmp.ne.s32.totalorder %s33, %s34
      %p48 = scmp.eq.s32.totalorder %s26, 1
      %p49 = por %p47, %p48
      %p51 = scmp.ne.s32.totalorder %s34, %s50
      %p52 = scmp.eq.s32.totalorder %s26, 0
      %p53 = por %p51, %p52
      %s55 = sadd.s32 %s54, 1
      %p58 = scmp.eq.s32.totalorder %s20, 1
      %p59 = scmp.ne.s32.totalorder %s54, %s56
      %p60 = scmp.eq.s32.totalorder %s20, 0
      %p61 = por %p59, %p60
      %p62 = scmp.ne.s32.totalorder %s54, %s56
      %p63 = scmp.eq.s32.totalorder %s25, 1
      %p64 = por %p62, %p63
      %p65 = scmp.ne.s32.totalorder %s56, %s57
      %p66 = scmp.eq.s32.totalorder %s25, 0
      %p67 = por %p65, %p66
      %p68 = scmp.ne.s32.totalorder %s56, %s57
      %p69 = scmp.eq.s32.totalorder %s26, 1
      %p70 = por %p68, %p69
      %p72 = scmp.ne.s32.totalorder %s57, %s71
      %p73 = scmp.eq.s32.totalorder %s26, 0
      %p74 = por %p72, %p73
      %s76 = sadd.s32 %s75, 1
      %p79 = scmp.eq.s32.totalorder %s20, 1
      %p80 = scmp.ne.s32.totalorder %s75, %s77
      %p81 = scmp.eq.s32.totalorder %s20, 0
      %p82 = por %p80, %p81
      %p83 = scmp.ne.s32.totalorder %s75, %s77
      %p84 = scmp.eq.s32.totalorder %s25, 1
      %p85 = por %p83, %p84
      %p86 = scmp.ne.s32.totalorder %s77, %s78
      %p87 = scmp.eq.s32.totalorder %s25, 0
      %p88 = por %p86, %p87
      %p89 = scmp.ne.s32.totalorder %s77, %s78
      %p90 = scmp.eq.s32.totalorder %s26, 1
      %p91 = por %p89, %p90
      %p93 = scmp.ne.s32.totalorder %s78, %s92
      %p94 = scmp.eq.s32.totalorder %s26, 0
      %p95 = por %p93, %p94
      %s97 = sadd.s32 %s96, 1
      %p100 = scmp.eq.s32.totalorder %s20, 1
      %p101 = scmp.ne.s32.totalorder %s96, %s98
      %p102 = scmp.eq.s32.totalorder %s20, 0
      %p103 = por %p101, %p102
      %p104 = scmp.ne.s32.totalorder %s96, %s98
      %p105 = scmp.eq.s32.totalorder %s25, 1
      %p106 = por %p104, %p105
      %p107 = scmp.ne.s32.totalorder %s98, %s99
      %p108 = scmp.eq.s32.totalorder %s25, 0
      %p109 = por %p107, %p108
      %p110 = scmp.ne.s32.totalorder %s98, %s99
      %p111 = scmp.eq.s32.totalorder %s26, 1
      %p112 = por %p110, %p111
      %p114 = scmp.ne.s32.totalorder %s99, %s113
      %p115 = scmp.eq.s32.totalorder %s26, 0
      %p116 = por %p114, %p115
      %s118 = sadd.s32 %s117, 1
      %p121 = scmp.eq.s32.totalorder %s20, 1
      %p122 = scmp.ne.s32.totalorder %s117, %s119
      %p123 = scmp.eq.s32.totalorder %s20, 0
      %p124 = por %p122, %p123
      %p125 = scmp.ne.s32.totalorder %s117, %s119
      %p126 = scmp.eq.s32.totalorder %s25, 1
      %p127 = por %p125, %p126
      %p128 = scmp.ne.s32.totalorder %s119, %s120
      %p129 = scmp.eq.s32.totalorder %s25, 0
      %p130 = por %p128, %p129
      %p131 = scmp.ne.s32.totalorder %s119, %s120
      %p132 = scmp.eq.s32.totalorder %s26, 1
      %p133 = por %p131, %p132
      %p135 = scmp.ne.s32.totalorder %s120, %s134
      %p136 = scmp.eq.s32.totalorder %s26, 0
      %p137 = por %p135, %p136
      %s139 = sadd.s32 %s138, 1
      %p142 = scmp.eq.s32.totalorder %s20, 1
      %p143 = scmp.ne.s32.totalorder %s138, %s140
      %p144 = scmp.eq.s32.totalorder %s20, 0
      %p145 = por %p143, %p144
      %p146 = scmp.ne.s32.totalorder %s138, %s140
      %p147 = scmp.eq.s32.totalorder %s25, 1
      %p148 = por %p146, %p147
      %p149 = scmp.ne.s32.totalorder %s140, %s141
      %p150 = scmp.eq.s32.totalorder %s25, 0
      %p151 = por %p149, %p150
      %p152 = scmp.ne.s32.totalorder %s140, %s141
      %p153 = scmp.eq.s32.totalorder %s26, 1
      %p154 = por %p152, %p153
      %p156 = scmp.ne.s32.totalorder %s141, %s155
      %p157 = scmp.eq.s32.totalorder %s26, 0
      %p158 = por %p156, %p157
      %s160 = sadd.s32 %s159, 1
      %p163 = scmp.eq.s32.totalorder %s20, 1
      %p164 = scmp.ne.s32.totalorder %s159, %s161
      %p165 = scmp.eq.s32.totalorder %s20, 0
      %p166 = por %p164, %p165
      %p167 = scmp.ne.s32.totalorder %s159, %s161
      %p168 = scmp.eq.s32.totalorder %s25, 1
      %p169 = por %p167, %p168
      %p170 = scmp.ne.s32.totalorder %s161, %s162
      %p171 = scmp.eq.s32.totalorder %s25, 0
      %p172 = por %p170, %p171
      %p173 = scmp.ne.s32.totalorder %s161, %s162
      %p174 = scmp.eq.s32.totalorder %s26, 1
      %p175 = por %p173, %p174
      %p177 = scmp.ne.s32.totalorder %s162, %s176
      %p178 = scmp.eq.s32.totalorder %s26, 0
      %p179 = por %p177, %p178
      %s181 = sadd.s32 %s180, 1
      %p184 = scmp.eq.s32.totalorder %s20, 1
      %p185 = scmp.ne.s32.totalorder %s180, %s182
      %p186 = scmp.eq.s32.totalorder %s20, 0
      %p187 = por %p185, %p186
      %p188 = scmp.ne.s32.totalorder %s180, %s182
      %p189 = scmp.eq.s32.totalorder %s25, 1
      %p190 = por %p188, %p189
      %p191 = scmp.ne.s32.totalorder %s182, %s183
      %p192 = scmp.eq.s32.totalorder %s25, 0
      %p193 = por %p191, %p192
      %p194 = scmp.ne.s32.totalorder %s182, %s183
      %p195 = scmp.eq.s32.totalorder %s26, 1
      %p196 = por %p194, %p195
      %p198 = scmp.ne.s32.totalorder %s183, %s197
      %p199 = scmp.eq.s32.totalorder %s26, 0
      %p200 = por %p198, %p199
      %s202 = sadd.s32 %s201, 1
      %p205 = scmp.eq.s32.totalorder %s20, 1
      %p206 = scmp.ne.s32.totalorder %s201, %s203
      %p207 = scmp.eq.s32.totalorder %s20, 0
      %p208 = por %p206, %p207
      %p209 = scmp.ne.s32.totalorder %s201, %s203
      %p210 = scmp.eq.s32.totalorder %s25, 1
      %p211 = por %p209, %p210
      %p212 = scmp.ne.s32.totalorder %s203, %s204
      %p213 = scmp.eq.s32.totalorder %s25, 0
      %p214 = por %p212, %p213
      %p215 = scmp.ne.s32.totalorder %s203, %s204
      %p216 = scmp.eq.s32.totalorder %s26, 1
      %p217 = por %p215, %p216
      %p219 = scmp.ne.s32.totalorder %s204, %s218
      %p220 = scmp.eq.s32.totalorder %s26, 0
      %p221 = por %p219, %p220
      %s222 = ssub.s32 %s20, %s27
      %p223 = scmp.eq.s32.totalorder %s222, 0
      %s225 = sadd.s32 %s224, 1
      %s226 = scalar_select %p223, %s224, %s225
      %p229 = pneg %p223
      %p230 = scmp.eq.s32.totalorder %s20, 1
      %p231 = por %p229, %p230
      %p232 = scmp.ne.s32.totalorder %s224, %s227
      %p233 = scmp.eq.s32.totalorder %s20, 0
      %p234 = por %p232, %p233
      %p235 = scmp.ne.s32.totalorder %s224, %s227
      %p236 = scmp.eq.s32.totalorder %s25, 1
      %p237 = por %p235, %p236
      %p238 = scmp.ne.s32.totalorder %s227, %s228
      %p239 = scmp.eq.s32.totalorder %s25, 0
      %p240 = por %p238, %p239
      %p241 = scmp.ne.s32.totalorder %s227, %s228
      %p242 = scmp.eq.s32.totalorder %s26, 1
      %p243 = por %p241, %p242
      %p245 = scmp.ne.s32.totalorder %s228, %s244
      %p246 = scmp.eq.s32.totalorder %s26, 0
      %p247 = por %p245, %p246
      %p248 = scmp.le.s32.totalorder 1, %s20
      %p249 = scmp.lt.s32.totalorder %s20, 3
      %p250 = pnand %p248, %p249
      %p251 = pneg %p250
      // Predicated region
      $region9: #{tpu_custom_call.1} parent=5 // pred_check
        _
      $region10: #{tpu_custom_call.1} parent=5 // pred_check_branch
        %253 = sbr.rel (%p250) target = $region12
      $region11: #{tpu_custom_call.1} parent=5 // pred_region
        %s254 = ssub.s32 %s20, 1
        // Predicated region
        $region13: #{tpu_custom_call.1} parent=11 // pred_check
          %p255 = pneg %p67
        $region14: #{tpu_custom_call.1} parent=11 // pred_check_branch
          %257 = sbr.rel (%p255) target = $region16
        $region15: #{tpu_custom_call.1} parent=11 // pred_region
          _
        $region16: #{tpu_custom_call.1} parent=11 // pred_fallthru
          _
        // Predicated region
        $region17: #{tpu_custom_call.1} parent=11 // pred_check
          %p258 = pneg %p88
        $region18: #{tpu_custom_call.1} parent=11 // pred_check_branch
          %260 = sbr.rel (%p258) target = $region20
        $region19: #{tpu_custom_call.1} parent=11 // pred_region
          _
        $region20: #{tpu_custom_call.1} parent=11 // pred_fallthru
          _
        // Predicated region
        $region21: #{tpu_custom_call.1} parent=11 // pred_check
          %p261 = pneg %p109
        $region22: #{tpu_custom_call.1} parent=11 // pred_check_branch
          %263 = sbr.rel (%p261) target = $region24
        $region23: #{tpu_custom_call.1} parent=11 // pred_region
          _
        $region24: #{tpu_custom_call.1} parent=11 // pred_fallthru
          _
        // Predicated region
        $region25: #{tpu_custom_call.1} parent=11 // pred_check
          %p264 = pneg %p130
        $region26: #{tpu_custom_call.1} parent=11 // pred_check_branch
          %266 = sbr.rel (%p264) target = $region28
        $region27: #{tpu_custom_call.1} parent=11 // pred_region
          _
        $region28: #{tpu_custom_call.1} parent=11 // pred_fallthru
          _
        // Predicated region
        $region29: #{tpu_custom_call.1} parent=11 // pred_check
          %p267 = pneg %p151
        $region30: #{tpu_custom_call.1} parent=11 // pred_check_branch
          %269 = sbr.rel (%p267) target = $region32
        $region31: #{tpu_custom_call.1} parent=11 // pred_region
          _
        $region32: #{tpu_custom_call.1} parent=11 // pred_fallthru
          _
        // Predicated region
        $region33: #{tpu_custom_call.1} parent=11 // pred_check
          %p270 = pneg %p172
        $region34: #{tpu_custom_call.1} parent=11 // pred_check_branch
          %272 = sbr.rel (%p270) target = $region36
        $region35: #{tpu_custom_call.1} parent=11 // pred_region
          _
        $region36: #{tpu_custom_call.1} parent=11 // pred_fallthru
          _
        // Predicated region
        $region37: #{tpu_custom_call.1} parent=11 // pred_check
          %p273 = pneg %p193
        $region38: #{tpu_custom_call.1} parent=11 // pred_check_branch
          %275 = sbr.rel (%p273) target = $region40
        $region39: #{tpu_custom_call.1} parent=11 // pred_region
          _
        $region40: #{tpu_custom_call.1} parent=11 // pred_fallthru
          _
        // Predicated region
        $region41: #{tpu_custom_call.1} parent=11 // pred_check
          %p276 = pneg %p214
        $region42: #{tpu_custom_call.1} parent=11 // pred_check_branch
          %278 = sbr.rel (%p276) target = $region44
        $region43: #{tpu_custom_call.1} parent=11 // pred_region
          _
        $region44: #{tpu_custom_call.1} parent=11 // pred_fallthru
          _
      $region12: #{tpu_custom_call.1} parent=5 // pred_fallthru
        _
      %p279 = scmp.lt.s32.totalorder %s20, 2
      // Predicated region
      $region45: #{tpu_custom_call.1} parent=5 // pred_check
        %p280 = pneg %p279
      $region46: #{tpu_custom_call.1} parent=5 // pred_check_branch
        %282 = sbr.rel (%p280) target = $region48
      $region47: #{tpu_custom_call.1} parent=5 // pred_region
        // Predicated region
        $region49: #{tpu_custom_call.1} parent=47 // pred_check
          %p283 = pneg %p40
        $region50: #{tpu_custom_call.1} parent=47 // pred_check_branch
          %285 = sbr.rel (%p283) target = $region52
        $region51: #{tpu_custom_call.1} parent=47 // pred_region
          %s286 = smul.u32 32, %s20
          %s287 = ssub.s32 38, %s286
          %p288 = scmp.lt.s32.totalorder %s287, 32
          %s289 = scalar_select %p288, %s287, 32
          %s290 = smul.u32 8, %s289
          %p291 = scmp.lt.s32.totalorder %s286, 37
          %s292 = scalar_select %p291, %s286, 37
          %s293 = smul.addr %s292, 8
          %s294 = scalar_lea.vmem %s0, %s293
          %s295 = smul.u32 32, %s20
          %s296 = ssub.s32 38, %s295
          %p297 = scmp.lt.s32.totalorder %s296, 32
          %s298 = scalar_select %p297, %s296, 32
          %s299 = smul.u32 8, %s298
        $region52: #{tpu_custom_call.1} parent=47 // pred_fallthru
          _
      $region48: #{tpu_custom_call.1} parent=5 // pred_fallthru
        _
      %p300 = scmp.le.s32.totalorder 1, %s20
      %p301 = scmp.lt.s32.totalorder %s20, 3
      %p302 = pnand %p300, %p301
      %p303 = pneg %p302
      // Predicated region
      $region53: #{tpu_custom_call.1} parent=5 // pred_check
        _
      $region54: #{tpu_custom_call.1} parent=5 // pred_check_branch
        %305 = sbr.rel (%p302) target = $region56
      $region55: #{tpu_custom_call.1} parent=5 // pred_region
        %s306 = ssub.s32 %s20, 1
        %s307 = smul.u32 32, %s25
        %s308 = ssub.s32 38, %s307
        %p309 = scmp.lt.s32.totalorder %s308, 32
        %s310 = scalar_select %p309, %s308, 32
        %s311 = smul.u32 8, %s310
        %p312 = scmp.lt.s32.totalorder %s307, 37
        %s313 = scalar_select %p312, %s307, 37
        %s314 = smul.addr %s313, 8
        %s315 = scalar_lea.vmem %s0, %s314
        %p316 = pneg %p46
        %p317 = pneg %p43
        %p318 = pneg %p67
        %p319 = pneg %p64
        %p320 = pneg %p88
        %p321 = pneg %p85
        %p322 = pneg %p109
        %p323 = pneg %p106
        %p324 = pneg %p130
        %p325 = pneg %p127
        %p326 = pneg %p151
        %p327 = pneg %p148
        %p328 = pneg %p172
        %p329 = pneg %p169
        %p330 = pneg %p193
        %p331 = pneg %p190
        %p332 = pneg %p214
        %p333 = pneg %p211
        %p334 = pneg %p240
        %p335 = pneg %p237
        %s336 = sand.u32 %s227, 1
        %s337 = scalar_lea.sflag [#allocation4], %s336
        %s338 = sand.u32 %s227, 1
        %s339 = smul.addr %s338, 2
        %s340 = scalar_lea.vmem [#allocation3], %s339
        %s341 = smul.u32 32, %s25
        %s342 = ssub.s32 38, %s341
        %p343 = scmp.lt.s32.totalorder %s342, 32
        %s344 = scalar_select %p343, %s342, 32
        %s345 = smul.u32 8, %s344
        %p346 = scmp.lt.s32.totalorder %s341, 37
        %s347 = scalar_select %p346, %s341, 37
        %s348 = smul.addr %s347, 8
        %s349 = scalar_lea.vmem %s0, %s348
        %s350 = smul.u32 32, %s25
        %s351 = ssub.s32 38, %s350
        %p352 = scmp.lt.s32.totalorder %s351, 32
        %s353 = scalar_select %p352, %s351, 32
        %s354 = smul.u32 8, %s353
        %s355 = smul.u32 2, %s25
        %s356 = ssub.s32 3, %s355
        %p357 = scmp.lt.s32.totalorder %s356, 2
        %s358 = scalar_select %p357, %s356, 2
        %v359 = vld [vmem:[%s349] sm:$0xff]
        %v360 = vld [vmem:[%s349 + $0x8] sm:$0xff]
        %v361 = vld [vmem:[%s349 + $0x10] sm:$0xff]
        %v362 = vld [vmem:[%s349 + $0x18] sm:$0xff]
        %v363 = vld [vmem:[%s349 + $0x20] sm:$0xff]
        %v364 = vld [vmem:[%s349 + $0x28] sm:$0xff]
        %v365 = vld [vmem:[%s349 + $0x30] sm:$0xff]
        %v366 = vld [vmem:[%s349 + $0x38] sm:$0xff]
        %v367 = vld [vmem:[%s349 + $0x40] sm:$0xff]
        %v368 = vld [vmem:[%s349 + $0x48] sm:$0xff]
        %v369 = vld [vmem:[%s349 + $0x50] sm:$0xff]
        %v370 = vld [vmem:[%s349 + $0x58] sm:$0xff]
        %v371 = vld [vmem:[%s349 + $0x60] sm:$0xff]
        %v372 = vld [vmem:[%s349 + $0x68] sm:$0xff]
        %v373 = vld [vmem:[%s349 + $0x70] sm:$0xff]
        %v374 = vld [vmem:[%s349 + $0x78] sm:$0xff]
        %v375 = vld [vmem:[%s349 + $0x80] sm:$0xff]
        %v376 = vld [vmem:[%s349 + $0x88] sm:$0xff]
        %v377 = vld [vmem:[%s349 + $0x90] sm:$0xff]
        %v378 = vld [vmem:[%s349 + $0x98] sm:$0xff]
        %v379 = vld [vmem:[%s349 + $0xa0] sm:$0xff]
        %v380 = vld [vmem:[%s349 + $0xa8] sm:$0xff]
        %v381 = vld [vmem:[%s349 + $0xb0] sm:$0xff]
        %v382 = vld [vmem:[%s349 + $0xb8] sm:$0xff]
        %v383 = vld [vmem:[%s349 + $0xc0] sm:$0xff]
        %v384 = vld [vmem:[%s349 + $0xc8] sm:$0xff]
        %v385 = vld [vmem:[%s349 + $0xd0] sm:$0xff]
        %v386 = vld [vmem:[%s349 + $0xd8] sm:$0xff]
        %v387 = vld [vmem:[%s349 + $0xe0] sm:$0xff]
        %v388 = vld [vmem:[%s349 + $0xe8] sm:$0xff]
        %v389 = vld [vmem:[%s349 + $0xf0] sm:$0xff]
        %v390 = vld [vmem:[%s349 + $0xf8] sm:$0xff]
        %v391 = vld [vmem:[%s1] sm:$0xff]
        %v392 = vld [vmem:[%s1 + $0x8] sm:$0xff]
        %v393 = vld [vmem:[%s1 + $0x10] sm:$0xff]
        %v394 = vld [vmem:[%s1 + $0x18] sm:$0xff]
        %v395 = vld [vmem:[%s2] sm:$0xff]
        %v396 = vld [vmem:[%s2 + $0x8] sm:$0xff]
        %v397 = vld [vmem:[%s2 + $0x10] sm:$0xff]
        %v398 = vld [vmem:[%s2 + $0x18] sm:$0xff]
        %400 = vset.pattern.permute.xlu0 0
        %401 = vperm.xlu0 %400, %v395
        %v402 = vpop.permute.xlu0 %401
        %405 = vset.pattern.permute.xlu0 0
        %406 = vperm.xlu0 %405, %v396
        %v407 = vpop.permute.xlu0 %406
        %410 = vset.pattern.permute.xlu0 0
        %411 = vperm.xlu0 %410, %v397
        %v412 = vpop.permute.xlu0 %411
        %415 = vset.pattern.permute.xlu0 0
        %416 = vperm.xlu0 %415, %v398
        %v417 = vpop.permute.xlu0 %416
        %vm419 = vcmask 64512
        %v421 = vsel %vm419, %v391, 0
        %v424 = vsel %vm419, %v392, 0
        %v427 = vsel %vm419, %v393, 0
        %v430 = vsel %vm419, %v394, 0
        %v433 = vsel %vm419, %v359, 0
        %v436 = vsel %vm419, %v360, 0
        %v439 = vsel %vm419, %v361, 0
        %v442 = vsel %vm419, %v362, 0
        %v445 = vsel %vm419, %v363, 0
        %v448 = vsel %vm419, %v364, 0
        %v451 = vsel %vm419, %v365, 0
        %v454 = vsel %vm419, %v366, 0
        %v457 = vsel %vm419, %v367, 0
        %v460 = vsel %vm419, %v368, 0
        %v463 = vsel %vm419, %v369, 0
        %v466 = vsel %vm419, %v370, 0
        %v469 = vsel %vm419, %v371, 0
        %v472 = vsel %vm419, %v372, 0
        %v475 = vsel %vm419, %v373, 0
        %v478 = vsel %vm419, %v374, 0
        %v481 = vsel %vm419, %v375, 0
        %v484 = vsel %vm419, %v376, 0
        %v487 = vsel %vm419, %v377, 0
        %v490 = vsel %vm419, %v378, 0
        %v493 = vsel %vm419, %v379, 0
        %v496 = vsel %vm419, %v380, 0
        %v499 = vsel %vm419, %v381, 0
        %v502 = vsel %vm419, %v382, 0
        %v505 = vsel %vm419, %v383, 0
        %v508 = vsel %vm419, %v384, 0
        %v511 = vsel %vm419, %v385, 0
        %v514 = vsel %vm419, %v386, 0
        %v517 = vsel %vm419, %v387, 0
        %v520 = vsel %vm419, %v388, 0
        %v523 = vsel %vm419, %v389, 0
        %v526 = vsel %vm419, %v390, 0
        %528 = vmatpush.xpose.msra.mxu0 %v478
        %529 = vmatpush.xpose.msra.mxu0 %v475
        %530 = vmatpush.xpose.msra.mxu0 %v472
        %531 = vmatpush.xpose.msra.mxu0 %v469
        %532 = vmatpush.xpose.msra.mxu0 %v466
        %533 = vmatpush.xpose.msra.mxu0 %v463
        %534 = vmatpush.xpose.msra.mxu0 %v460
        %535 = vmatpush.xpose.msra.mxu0 %v457
        %536 = vmatpush.xpose.msra.mxu0 %v454
        %537 = vmatpush.xpose.msra.mxu0 %v451
        %538 = vmatpush.xpose.msra.mxu0 %v448
        %539 = vmatpush.xpose.msra.mxu0 %v445
        %540 = vmatpush.xpose.msra.mxu0 %v442
        %541 = vmatpush.xpose.msra.mxu0 %v439
        %542 = vmatpush.xpose.msra.mxu0 %v436
        %543 = vmatpush.xpose.msra.mxu0 %v433
        %544 = vmatmul.f32.gmra.mxu0 %v421
        %v545 = vpop.f32.mrf.mxu0
        %v546 = vadd.f32 %v402, %v545
        %547 = vmatmul.f32.gmra.mxu0 %v424
        %v548 = vpop.f32.mrf.mxu0
        %v549 = vadd.f32 %v407, %v548
        %550 = vmatmul.f32.gmra.mxu0 %v427
        %v551 = vpop.f32.mrf.mxu0
        %v552 = vadd.f32 %v412, %v551
        %553 = vmatmul.f32.gmra.mxu0 %v430
        %v554 = vpop.f32.mrf.mxu0
        %v555 = vadd.f32 %v417, %v554
        %556 = vdwg.mxu0
        %557 = vmatpush.xpose.msra.mxu0 %v526
        %558 = vmatpush.xpose.msra.mxu0 %v523
        %559 = vmatpush.xpose.msra.mxu0 %v520
        %560 = vmatpush.xpose.msra.mxu0 %v517
        %561 = vmatpush.xpose.msra.mxu0 %v514
        %562 = vmatpush.xpose.msra.mxu0 %v511
        %563 = vmatpush.xpose.msra.mxu0 %v508
        %564 = vmatpush.xpose.msra.mxu0 %v505
        %565 = vmatpush.xpose.msra.mxu0 %v502
        %566 = vmatpush.xpose.msra.mxu0 %v499
        %567 = vmatpush.xpose.msra.mxu0 %v496
        %568 = vmatpush.xpose.msra.mxu0 %v493
        %569 = vmatpush.xpose.msra.mxu0 %v490
        %570 = vmatpush.xpose.msra.mxu0 %v487
        %571 = vmatpush.xpose.msra.mxu0 %v484
        %572 = vmatpush.xpose.msra.mxu0 %v481
        %573 = vmatmul.f32.gmra.mxu0 %v421
        %v574 = vpop.f32.mrf.mxu0
        %v575 = vadd.f32 %v402, %v574
        %576 = vmatmul.f32.gmra.mxu0 %v424
        %v577 = vpop.f32.mrf.mxu0
        %v578 = vadd.f32 %v407, %v577
        %579 = vmatmul.f32.gmra.mxu0 %v427
        %v580 = vpop.f32.mrf.mxu0
        %v581 = vadd.f32 %v412, %v580
        %582 = vmatmul.f32.gmra.mxu0 %v430
        %v583 = vpop.f32.mrf.mxu0
        %v584 = vadd.f32 %v417, %v583
        %585 = vdwg.mxu0
        %v586 = vtanh.pop %v546
        %v587 = vtanh.pop %v575
        %v588 = vtanh.pop %v549
        %v589 = vtanh.pop %v578
        %v590 = vtanh.pop %v552
        %v591 = vtanh.pop %v581
        %v592 = vtanh.pop %v555
        %v593 = vtanh.pop %v584
        %v594 = vld [vmem:[%s3] sm:$0xff]
        %v595 = vld [vmem:[%s3 + $0x8] sm:$0xff]
        %v596 = vld [vmem:[%s4] sm:$0xff]
        %v597 = vld [vmem:[%s4 + $0x8] sm:$0xff]
        %599 = vset.pattern.permute.xlu0 0
        %600 = vperm.xlu0 %599, %v596
        %v601 = vpop.permute.xlu0 %600
        %604 = vset.pattern.permute.xlu0 0
        %605 = vperm.xlu0 %604, %v597
        %v606 = vpop.permute.xlu0 %605
        %vm608 = vcmask 261120
        %v610 = vsel %vm608, %v594, 0
        %v613 = vsel %vm608, %v595, 0
        %615 = vmatpush.msra.mxu0 0.0
        %616 = vmatpush.msra.mxu0 0.0
        %617 = vmatpush.msra.mxu0 0.0
        %618 = vmatpush.msra.mxu0 0.0
        %619 = vmatpush.msra.mxu0 0.0
        %620 = vmatpush.msra.mxu0 0.0
        %621 = vmatpush.msra.mxu0 0.0
        %622 = vmatpush.msra.mxu0 0.0
        %623 = vmatpush.msra.mxu0 0.0
        %624 = vmatpush.msra.mxu0 0.0
        %625 = vmatpush.msra.mxu0 0.0
        %626 = vmatpush.msra.mxu0 0.0
        %627 = vmatpush.msra.mxu0 %v592
        %628 = vmatpush.msra.mxu0 %v590
        %629 = vmatpush.msra.mxu0 %v588
        %630 = vmatpush.msra.mxu0 %v586
        %631 = vmatmul.f32.gmra.mxu0 %v610
        %v632 = vpop.f32.mrf.mxu0
        %v633 = vadd.f32 %v601, %v632
        %634 = vmatmul.f32.gmra.mxu0 %v613
        %v635 = vpop.f32.mrf.mxu0
        %v636 = vadd.f32 %v606, %v635
        %637 = vdwg.mxu0
        %638 = vmatpush.msra.mxu0 0.0
        %639 = vmatpush.msra.mxu0 0.0
        %640 = vmatpush.msra.mxu0 0.0
        %641 = vmatpush.msra.mxu0 0.0
        %642 = vmatpush.msra.mxu0 0.0
        %643 = vmatpush.msra.mxu0 0.0
        %644 = vmatpush.msra.mxu0 0.0
        %645 = vmatpush.msra.mxu0 0.0
        %646 = vmatpush.msra.mxu0 0.0
        %647 = vmatpush.msra.mxu0 0.0
        %648 = vmatpush.msra.mxu0 0.0
        %649 = vmatpush.msra.mxu0 0.0
        %650 = vmatpush.msra.mxu0 %v593
        %651 = vmatpush.msra.mxu0 %v591
        %652 = vmatpush.msra.mxu0 %v589
        %653 = vmatpush.msra.mxu0 %v587
        %654 = vmatmul.f32.gmra.mxu0 %v610
        %v655 = vpop.f32.mrf.mxu0
        %v656 = vadd.f32 %v601, %v655
        %657 = vmatmul.f32.gmra.mxu0 %v613
        %v658 = vpop.f32.mrf.mxu0
        %v659 = vadd.f32 %v606, %v658
        %660 = vdwg.mxu0
        %v661 = vtanh.pop %v633
        %v662 = vtanh.pop %v656
        %v663 = vtanh.pop %v636
        %v664 = vtanh.pop %v659
        %v665 = vld [vmem:[%s5] sm:$0xff]
        %v666 = vld [vmem:[%s6] sm:$0xff]
        %668 = vset.pattern.permute.xlu0 0
        %669 = vperm.xlu0 %668, %v666
        %v670 = vpop.permute.xlu0 %669
        %vm672 = vcmask 130048
        %v674 = vsel %vm672, %v665, 0
        %676 = vmatpush.msra.mxu0 0.0
        %677 = vmatpush.msra.mxu0 0.0
        %678 = vmatpush.msra.mxu0 0.0
        %679 = vmatpush.msra.mxu0 0.0
        %680 = vmatpush.msra.mxu0 0.0
        %681 = vmatpush.msra.mxu0 0.0
        %682 = vmatpush.msra.mxu0 0.0
        %683 = vmatpush.msra.mxu0 0.0
        %684 = vmatpush.msra.mxu0 0.0
        %685 = vmatpush.msra.mxu0 0.0
        %686 = vmatpush.msra.mxu0 0.0
        %687 = vmatpush.msra.mxu0 0.0
        %688 = vmatpush.msra.mxu0 0.0
        %689 = vmatpush.msra.mxu0 0.0
        %690 = vmatpush.msra.mxu0 %v663
        %691 = vmatpush.msra.mxu0 %v661
        %692 = vmatmul.f32.gmra.mxu0 %v674
        %v693 = vpop.f32.mrf.mxu0
        %v694 = vadd.f32 %v670, %v693
        %695 = vdwg.mxu0
        %696 = vmatpush.msra.mxu0 0.0
        %697 = vmatpush.msra.mxu0 0.0
        %698 = vmatpush.msra.mxu0 0.0
        %699 = vmatpush.msra.mxu0 0.0
        %700 = vmatpush.msra.mxu0 0.0
        %701 = vmatpush.msra.mxu0 0.0
        %702 = vmatpush.msra.mxu0 0.0
        %703 = vmatpush.msra.mxu0 0.0
        %704 = vmatpush.msra.mxu0 0.0
        %705 = vmatpush.msra.mxu0 0.0
        %706 = vmatpush.msra.mxu0 0.0
        %707 = vmatpush.msra.mxu0 0.0
        %708 = vmatpush.msra.mxu0 0.0
        %709 = vmatpush.msra.mxu0 0.0
        %710 = vmatpush.msra.mxu0 %v664
        %711 = vmatpush.msra.mxu0 %v662
        %712 = vmatmul.f32.gmra.mxu0 %v674
        %v713 = vpop.f32.mrf.mxu0
        %v714 = vadd.f32 %v670, %v713
        %715 = vdwg.mxu0
        %v716 = vtanh.pop %v694
        %v717 = vtanh.pop %v714
        %v718 = vld [vmem:[%s7] sm:$0x1]
        %v719 = vld [vmem:[#allocation2] sm:$0x1]
        %721 = vset.pattern.permute.xlu0 0
        %722 = vperm.xlu0 %721, %v719
        %v723 = vpop.permute.xlu0 %722
        %v725 = vperm.slane %v723, 0
        %v727 = vsel %vm419, %v718, 0
        %729 = vmatpush.msra.mxu0 0.0
        %730 = vmatpush.msra.mxu0 0.0
        %731 = vmatpush.msra.mxu0 0.0
        %732 = vmatpush.msra.mxu0 0.0
        %733 = vmatpush.msra.mxu0 0.0
        %734 = vmatpush.msra.mxu0 0.0
        %735 = vmatpush.msra.mxu0 0.0
        %736 = vmatpush.msra.mxu0 0.0
        %737 = vmatpush.msra.mxu0 0.0
        %738 = vmatpush.msra.mxu0 0.0
        %739 = vmatpush.msra.mxu0 0.0
        %740 = vmatpush.msra.mxu0 0.0
        %741 = vmatpush.msra.mxu0 0.0
        %742 = vmatpush.msra.mxu0 0.0
        %743 = vmatpush.msra.mxu0 0.0
        %744 = vmatpush.msra.mxu0 %v716
        %745 = vmatmul.f32.gmra.mxu0 %v727
        %v746 = vpop.f32.mrf.mxu0
        %v747 = vadd.f32 %v725, %v746
        %748 = vdwg.mxu0
        %749 = vmatpush.msra.mxu0 0.0
        %750 = vmatpush.msra.mxu0 0.0
        %751 = vmatpush.msra.mxu0 0.0
        %752 = vmatpush.msra.mxu0 0.0
        %753 = vmatpush.msra.mxu0 0.0
        %754 = vmatpush.msra.mxu0 0.0
        %755 = vmatpush.msra.mxu0 0.0
        %756 = vmatpush.msra.mxu0 0.0
        %757 = vmatpush.msra.mxu0 0.0
        %758 = vmatpush.msra.mxu0 0.0
        %759 = vmatpush.msra.mxu0 0.0
        %760 = vmatpush.msra.mxu0 0.0
        %761 = vmatpush.msra.mxu0 0.0
        %762 = vmatpush.msra.mxu0 0.0
        %763 = vmatpush.msra.mxu0 0.0
        %764 = vmatpush.msra.mxu0 %v717
        %765 = vmatmul.f32.gmra.mxu0 %v727
        %v766 = vpop.f32.mrf.mxu0
        %v767 = vadd.f32 %v725, %v766
        %768 = vdwg.mxu0
        %v771 = vrot.slane %v767, 7
        %vm772 = vcmask 1040384
        %v773 = vsel %vm772, %v747, %v771
        %v775 = vlaneseq
        %vm776 = vcmp.ge.s32.totalorder %v775, 0
        %vm777 = vcmp.lt.s32.totalorder %v775, 256
        %vm778 = vmand %vm776, %vm777
        %779 = vst.msk [vmem:[%s340] sm:$0x3] %vm778, %v773
        %s780 = sand.u32 %s227, 1
        %s781 = scalar_lea.sflag [#allocation4], %s780
        %s782 = sand.u32 %s227, 1
        %s783 = smul.addr %s782, 2
        %s784 = scalar_lea.vmem [#allocation3], %s783
        // Predicated region
        $region57: #{tpu_custom_call.1} parent=55 // pred_check
          %p785 = pneg %p237
        $region58: #{tpu_custom_call.1} parent=55 // pred_check_branch
          %787 = sbr.rel (%p785) target = $region60
        $region59: #{tpu_custom_call.1} parent=55 // pred_region
          %s788 = smul.u32 2, %s25
          %s789 = ssub.s32 3, %s788
          %p790 = scmp.lt.s32.totalorder %s789, 2
          %s791 = scalar_select %p790, %s789, 2
          %s792 = ssub.s32 2, %s791
          %s793 = sshll.u32 %s792, 4
          %794 = vsyncadd %s781, %s793
          %p795 = scmp.ne.s32.totalorder 0, %s791
          %s796 = scalar_lea.hbm %s9, %s788
          %s797 = sshll.u32 %s791, 4
          %s798 = sshll.u32 %s784, 4
          %s799 = int_to_ptr.vmem [resolvable:$true] %s798
          %s800 = sshll.u32 %s796, 4
          %s801 = int_to_ptr.hbm [resolvable:$true] %s800
          %803 = dma.vmem_to_hbm [thread:$0]  (%p795), %s799, %s797, %s801, %s781
        $region60: #{tpu_custom_call.1} parent=55 // pred_fallthru
          _
      $region56: #{tpu_custom_call.1} parent=5 // pred_fallthru
        _
      %p804 = scmp.le.s32.totalorder 2, %s20
      // Predicated region
      $region61: #{tpu_custom_call.1} parent=5 // pred_check
        %p805 = pneg %p804
      $region62: #{tpu_custom_call.1} parent=5 // pred_check_branch
        %807 = sbr.rel (%p805) target = $region64
      $region63: #{tpu_custom_call.1} parent=5 // pred_region
        %s808 = ssub.s32 %s20, 2
        // Predicated region
        $region65: #{tpu_custom_call.1} parent=63 // pred_check
          %p809 = pneg %p243
        $region66: #{tpu_custom_call.1} parent=63 // pred_check_branch
          %811 = sbr.rel (%p809) target = $region68
        $region67: #{tpu_custom_call.1} parent=63 // pred_region
          %s812 = sand.u32 %s228, 1
          %s813 = scalar_lea.sflag [#allocation4], %s812
          %s814 = sand.u32 %s228, 1
          %s815 = smul.addr %s814, 2
          %s816 = scalar_lea.vmem [#allocation3], %s815
          %818 = dma.done %s813, 32
        $region68: #{tpu_custom_call.1} parent=63 // pred_fallthru
          _
      $region64: #{tpu_custom_call.1} parent=5 // pred_fallthru
        _
    $region6: #{tpu_custom_call.1} parent=1 // loop_footer
      %s24 = sadd.s32 1, %s20
    $region7: #{tpu_custom_call.1} parent=1 // loop_footer_branch
      %19 = sbr.rel target = $region3
    $region8: #{tpu_custom_call.1} parent=1 // loop_exit
      _
    %819 = vsyncpa [#allocation4], 1
    %s820 = scalar_lea.sflag [#allocation4], 1
    %821 = vsyncpa %s820, 1

</llo_original>
